<compile_context>
chip_gen: v7x
topology: tpu7x:2x2x1
jax: 0.10.0
libtpu: 0.0.40
codegen_flags: <defaults>
</compile_context>

<pallas_src>
import jax
import jax.numpy as jnp
from jax.experimental import pallas as pl
from jax.experimental.pallas import tpu as pltpu

CIN = 1                       # MedicalNet takes single-channel 3D volumes
COUT = 16                     # synthetic stem output channels
KSIZE = 3
STRIDE = 2
PAD = 1
K = CIN * KSIZE ** 3          # 27 — intentionally NOT padded (perf review item 2)
EPS = 1e-10
MAX_TS = 8192                 # lane tile over the flattened spatial axis; safe for
                              # v5e's 16 MiB default scoped VMEM (perf review item 9)


def _round_up(a, b):
    return (a + b - 1) // b * b


def _choose_tile(spad):
    """Largest multiple of 128 that is <= MAX_TS and divides spad (spad % 128 == 0)."""
    ts = min(MAX_TS, spad)
    ts -= ts % 128
    while spad % ts:
        ts -= 128
    return ts


# ----------------------------------------------------------------------------
# Fused kernel: conv3d (im2col matmul) + ReLU + cosine-form channel reduction.
# ----------------------------------------------------------------------------
def _fused_conv_perceptual_kernel(w_ref, px_ref, py_ref, o_ref):
    # w_ref : (COUT, K)  bf16, resident (constant index_map)
    # px/py : (1, K, TS) bf16 patch tiles of the mean-centred input / target
    # o_ref : (1, 1, TS) f32 per-voxel sum_c (fx_hat - fy_hat)^2
    w = w_ref[...]
    fx = jnp.maximum(
        jnp.dot(w, px_ref[0], preferred_element_type=jnp.float32), 0.0)   # (COUT, TS)
    fy = jnp.maximum(
        jnp.dot(w, py_ref[0], preferred_element_type=jnp.float32), 0.0)
    # Cosine form: only three (1, TS) accumulators live; fx*inv_nx / fy*inv_ny / d
    # are never materialised (kills the (COUT,TS) spill stores — perf review item 1).
    sxx = jnp.sum(fx * fx, axis=0, keepdims=True)                          # (1, TS)
    syy = jnp.sum(fy * fy, axis=0, keepdims=True)
    sxy = jnp.sum(fx * fy, axis=0, keepdims=True)
    inv_nx = pl.reciprocal(jnp.sqrt(sxx) + EPS, approx=True)               # EUP slot
    inv_ny = pl.reciprocal(jnp.sqrt(syy) + EPS, approx=True)
    # All-zero feature vectors (incl. zero-padded tail lanes): s** == 0 exactly and
    # 0 * approx(1/EPS)^2 == 0, so they contribute nothing — same as the reference.
    o_ref[0] = (sxx * (inv_nx * inv_nx) + syy * (inv_ny * inv_ny)
                - 2.0 * sxy * (inv_nx * inv_ny))


# ----------------------------------------------------------------------------
# im2col preprocessing (XLA): patches of the mean-centred bf16 volume.
# ----------------------------------------------------------------------------
def _im2col(vc):
    """vc: (B, CIN, D, H, W) bf16 -> patches (B, K, Spad) bf16, plus (S, TS)."""
    B = vc.shape[0]
    patches = jax.lax.conv_general_dilated_patches(
        vc, filter_shape=(KSIZE,) * 3, window_strides=(STRIDE,) * 3,
        padding=[(PAD, PAD)] * 3)                        # (B, K, Do, Ho, Wo)
    Do, Ho, Wo = patches.shape[2:]
    S = Do * Ho * Wo
    Spad = _round_up(S, 128)                             # minimal pad (none if S%128==0)
    ts = _choose_tile(Spad)
    p = patches.reshape(B, K, S)                         # trailing-dim collapse, free
    if Spad != S:
        p = jnp.pad(p, ((0, 0), (0, 0), (0, Spad - S)))  # <=127 lanes, zeros
    return p, S, ts


def fused_conv_perceptual(px, py, w2, *, n_spatial, ts):
    """px/py: (B, K, Spad) bf16 patches, w2: (COUT, K) bf16. Returns scalar loss."""
    B, _, Spad = px.shape
    grid = (B, Spad // ts)
    out = pl.pallas_call(
        _fused_conv_perceptual_kernel,
        out_shape=jax.ShapeDtypeStruct((B, 1, Spad), jnp.float32),
        grid_spec=pltpu.PrefetchScalarGridSpec(
            num_scalar_prefetch=0,
            grid=grid,
            in_specs=[
                pl.BlockSpec((COUT, K), lambda b, s: (0, 0)),     # resident weights
                pl.BlockSpec((1, K, ts), lambda b, s: (b, 0, s)),
                pl.BlockSpec((1, K, ts), lambda b, s: (b, 0, s)),
            ],
            out_specs=pl.BlockSpec((1, 1, ts), lambda b, s: (b, 0, s))),
        compiler_params=pltpu.CompilerParams(
            dimension_semantics=("parallel", "parallel")),
    )(w2, px, py)
    # Tail lanes are exact zeros and are sliced away before the mean anyway.
    return out[:, 0, :n_spatial].sum() / (B * n_spatial)


# ----------------------------------------------------------------------------
# Module forward (glue in plain JAX)
# ----------------------------------------------------------------------------
@jax.jit
def medicalnet_perceptual_similarity(inp, tgt, conv_w):
    """inp: (B, Cin>=1, D, H, W); tgt: (B, 1, D, H, W). Returns scalar loss."""
    x = inp[:, 0:1]
    y = tgt
    # Intensity normalisation: only the mean shift is applied; the positive
    # per-volume 1/std scale cancels exactly through the channel L2-norm
    # (up to the 1e-10 eps), so std is never computed (perf review item 4).
    # Centring BEFORE the bf16 cast keeps bf16 precision relative to the
    # volume's variation, not its offset.
    xc = (x - x.mean()).astype(jnp.bfloat16)
    yc = (y - y.mean()).astype(jnp.bfloat16)
    px, S, TS = _im2col(xc)
    py, _, _ = _im2col(yc)
    w2 = conv_w.reshape(COUT, K).astype(jnp.bfloat16)    # (COUT, 27) — no KPAD pad
    return fused_conv_perceptual(px, py, w2, n_spatial=S, ts=TS)


# ----------------------------------------------------------------------------
# Pure-JAX f32 reference (faithful port of the PyTorch forward, for checking)
# ----------------------------------------------------------------------------
def _reference(inp, tgt, conv_w):
    def inorm(v):
        return (v - v.mean()) / jnp.std(v, ddof=1)       # torch .std() is unbiased

    x = inorm(inp[:, 0:1])
    y = inorm(tgt)

    def feat(v):
        o = jax.lax.conv_general_dilated(
            v, conv_w, (STRIDE,) * 3, [(PAD, PAD)] * 3,
            dimension_numbers=("NCDHW", "OIDHW", "NCDHW"))
        return jnp.maximum(o, 0.0)

    def norm(t):
        return t / (jnp.sqrt(jnp.sum(t ** 2, axis=1, keepdims=True)) + EPS)

    d = (norm(feat(x)) - norm(feat(y))) ** 2
    r = d.sum(axis=1, keepdims=True).mean(axis=(2, 3, 4), keepdims=True)
    return r.mean()


if __name__ == "__main__":
    key = jax.random.PRNGKey(0)
    k1, k2, k3 = jax.random.split(key, 3)

    B, D, H, W = 2, 16, 16, 16
    inp = jax.random.normal(k1, (B, 2, D, H, W), dtype=jnp.float32)   # extra chan, sliced [:, 0:1]
    tgt = jax.random.normal(k2, (B, 1, D, H, W), dtype=jnp.float32)
    conv_w = 0.1 * jax.random.normal(k3, (COUT, CIN, KSIZE, KSIZE, KSIZE),
                                     dtype=jnp.float32)

    loss = jax.block_until_ready(medicalnet_perceptual_similarity(inp, tgt, conv_w))
    ref = jax.block_until_ready(_reference(inp, tgt, conv_w))
    # Tolerance accounts for bf16 patch/weight storage (the original MedicalNet
    # model itself runs in fp16) + EUP approx reciprocal; measured error is ~1e-4.
    assert jnp.allclose(loss, ref, rtol=5e-3, atol=5e-4), (loss, ref)

    print("KERNEL_OK")
</pallas_src>

<mosaic_0001>
module attributes {stable_mosaic.version = 11 : i64} {
  func.func @_fused_conv_perceptual_kernel(%arg0: i32, %arg1: i32, %arg2: memref<16x27xbf16, #tpu.memory_space<vmem>>, %arg3: memref<1x27x512xbf16, #tpu.memory_space<vmem>>, %arg4: memref<1x27x512xbf16, #tpu.memory_space<vmem>>, %arg5: memref<1x1x512xf32, #tpu.memory_space<vmem>>) attributes {dimension_semantics = [#tpu.dimension_semantics<parallel>, #tpu.dimension_semantics<parallel>], iteration_bounds = array<i64: 2, 1>, scalar_prefetch = 0 : i64, scratch_operands = 0 : i64, tpu.core_type = #tpu.core_type<tc>, window_params = [{pipeline_mode = #tpu.pipeline_mode<synchronous>, transform_indices = @transform_0, window_bounds = array<i64: 16, 27>}, {transform_indices = @transform_1, window_bounds = array<i64: 1, 27, 512>}, {transform_indices = @transform_2, window_bounds = array<i64: 1, 27, 512>}, {transform_indices = @transform_3, window_bounds = array<i64: 1, 1, 512>}]} {
    %c0 = arith.constant 0 : index
    %c0_0 = arith.constant 0 : index
    %0 = vector.load %arg2[%c0, %c0_0] : memref<16x27xbf16, #tpu.memory_space<vmem>>, vector<16x27xbf16>
    %c0_1 = arith.constant 0 : index
    %c0_2 = arith.constant 0 : index
    %c0_3 = arith.constant 0 : index
    %1 = vector.load %arg3[%c0_1, %c0_2, %c0_3] : memref<1x27x512xbf16, #tpu.memory_space<vmem>>, vector<1x27x512xbf16>
    %2 = vector.shape_cast %1 : vector<1x27x512xbf16> to vector<27x512xbf16>
    %cst = arith.constant dense<0.000000e+00> : vector<16x512xf32>
    %3 = tpu.matmul %0, %2, %cst {dimension_numbers = #tpu.dot_dimension_numbers<[1], [0], [0], [1], [0, 0, 1, 1], [], []>} : vector<16x27xbf16>, vector<27x512xbf16>, vector<16x512xf32> -> vector<16x512xf32>
    %cst_4 = arith.constant 0.000000e+00 : f32
    %4 = vector.broadcast %cst_4 : f32 to vector<16x512xf32>
    %5 = arith.maximumf %3, %4 : vector<16x512xf32>
    %c0_5 = arith.constant 0 : index
    %c0_6 = arith.constant 0 : index
    %c0_7 = arith.constant 0 : index
    %6 = vector.load %arg4[%c0_5, %c0_6, %c0_7] : memref<1x27x512xbf16, #tpu.memory_space<vmem>>, vector<1x27x512xbf16>
    %7 = vector.shape_cast %6 : vector<1x27x512xbf16> to vector<27x512xbf16>
    %cst_8 = arith.constant dense<0.000000e+00> : vector<16x512xf32>
    %8 = tpu.matmul %0, %7, %cst_8 {dimension_numbers = #tpu.dot_dimension_numbers<[1], [0], [0], [1], [0, 0, 1, 1], [], []>} : vector<16x27xbf16>, vector<27x512xbf16>, vector<16x512xf32> -> vector<16x512xf32>
    %cst_9 = arith.constant 0.000000e+00 : f32
    %9 = vector.broadcast %cst_9 : f32 to vector<16x512xf32>
    %10 = arith.maximumf %8, %9 : vector<16x512xf32>
    %11 = arith.mulf %5, %5 : vector<16x512xf32>
    %cst_10 = arith.constant dense<0.000000e+00> : vector<512xf32>
    %12 = vector.multi_reduction <add>, %11, %cst_10 [0] : vector<16x512xf32> to vector<512xf32>
    %13 = vector.shape_cast %12 : vector<512xf32> to vector<1x512xf32>
    %14 = arith.mulf %10, %10 : vector<16x512xf32>
    %cst_11 = arith.constant dense<0.000000e+00> : vector<512xf32>
    %15 = vector.multi_reduction <add>, %14, %cst_11 [0] : vector<16x512xf32> to vector<512xf32>
    %16 = vector.shape_cast %15 : vector<512xf32> to vector<1x512xf32>
    %17 = arith.mulf %5, %10 : vector<16x512xf32>
    %cst_12 = arith.constant dense<0.000000e+00> : vector<512xf32>
    %18 = vector.multi_reduction <add>, %17, %cst_12 [0] : vector<16x512xf32> to vector<512xf32>
    %19 = vector.shape_cast %18 : vector<512xf32> to vector<1x512xf32>
    %20 = math.sqrt %13 : vector<1x512xf32>
    %cst_13 = arith.constant 1.000000e-10 : f32
    %21 = vector.broadcast %cst_13 : f32 to vector<1x512xf32>
    %22 = arith.addf %20, %21 : vector<1x512xf32>
    %23 = tpu.reciprocal %22 {approx = true} : vector<1x512xf32> -> vector<1x512xf32>
    %24 = math.sqrt %16 : vector<1x512xf32>
    %cst_14 = arith.constant 1.000000e-10 : f32
    %25 = vector.broadcast %cst_14 : f32 to vector<1x512xf32>
    %26 = arith.addf %24, %25 : vector<1x512xf32>
    %27 = tpu.reciprocal %26 {approx = true} : vector<1x512xf32> -> vector<1x512xf32>
    %28 = arith.mulf %23, %23 : vector<1x512xf32>
    %29 = arith.mulf %13, %28 : vector<1x512xf32>
    %30 = arith.mulf %27, %27 : vector<1x512xf32>
    %31 = arith.mulf %16, %30 : vector<1x512xf32>
    %32 = arith.addf %29, %31 : vector<1x512xf32>
    %cst_15 = arith.constant 2.000000e+00 : f32
    %33 = vector.broadcast %cst_15 : f32 to vector<1x512xf32>
    %34 = arith.mulf %33, %19 : vector<1x512xf32>
    %35 = arith.mulf %23, %27 : vector<1x512xf32>
    %36 = arith.mulf %34, %35 : vector<1x512xf32>
    %37 = arith.subf %32, %36 : vector<1x512xf32>
    %c0_16 = arith.constant 0 : index
    %c0_17 = arith.constant 0 : index
    %c0_18 = arith.constant 0 : index
    %38 = vector.load %arg5[%c0_16, %c0_17, %c0_18] : memref<1x1x512xf32, #tpu.memory_space<vmem>>, vector<1x1x512xf32>
    %39 = vector.shape_cast %38 : vector<1x1x512xf32> to vector<1x512xf32>
    %40 = vector.shape_cast %37 : vector<1x512xf32> to vector<1x1x512xf32>
    tpu.vector_store %arg5[%c0_16, %c0_17, %c0_18], %40 {strides = array<i32>} : memref<1x1x512xf32, #tpu.memory_space<vmem>>, vector<1x1x512xf32>,
    return
  }
  func.func @transform_0(%arg0: i32, %arg1: i32) -> (i32, i32) {
    %c0_i32 = arith.constant 0 : i32
    %c0_i32_0 = arith.constant 0 : i32
    %c0_i32_1 = arith.constant 0 : i32
    return %c0_i32, %c0_i32_0 : i32, i32
  }
  func.func @transform_1(%arg0: i32, %arg1: i32) -> (i32, i32, i32) {
    %c0_i32 = arith.constant 0 : i32
    %c0_i32_0 = arith.constant 0 : i32
    return %arg0, %c0_i32, %arg1 : i32, i32, i32
  }
  func.func @transform_2(%arg0: i32, %arg1: i32) -> (i32, i32, i32) {
    %c0_i32 = arith.constant 0 : i32
    %c0_i32_0 = arith.constant 0 : i32
    return %arg0, %c0_i32, %arg1 : i32, i32, i32
  }
  func.func @transform_3(%arg0: i32, %arg1: i32) -> (i32, i32, i32) {
    %c0_i32 = arith.constant 0 : i32
    %c0_i32_0 = arith.constant 0 : i32
    return %arg0, %c0_i32, %arg1 : i32, i32, i32
  }
}

</mosaic_0001>

<llo_original>
// kernel: medicalnet_perceptual_similarity.1
$region0: #{medicalnet_perceptual_similarity.1}
  #allocation0 [shape = 'u32[]', space=smem, size = 0x4, offset = 0x4, fixed_abs, tag = 'smem constant byte address 0x4 - core index']
  #allocation1 [shape = 'u32[144,128]{1,0:T(1,128)}', space=vmem, size = 0x12000, scoped, tag = 'internal scratch']
  %s0 = inlined_call_operand.vmem [shape: bf16[16,27], index: 0, kind: input, shape index: {}]
  %s1 = inlined_call_operand.vmem [shape: bf16[2,27,512], index: 1, kind: input, shape index: {}]
  %s2 = inlined_call_operand.vmem [shape: bf16[2,27,512], index: 2, kind: input, shape index: {}]
  %s3 = inlined_call_operand.vmem [shape: f32[2,1,512], index: 3, kind: output, shape index: {}]
  %s4 = sld [smem:[#allocation0]]
  $region45: #{medicalnet_perceptual_similarity.1} parent=0
    _
  %s6 = ssub.s32 1, %s4
  %s7 = scalar_select 0, %s6, %s4
  loop: start=0, step=1, limit=4
  $region2: #{medicalnet_perceptual_similarity.1} parent=0 // loop_pre_header
    _
  $region3: #{medicalnet_perceptual_similarity.1} parent=0 // loop_header
    %s9 = sphi 0, %s13
    %p10 = scmp.ge.s32.totalorder %s9, 4
    %s16 = sphi 0, %s28
    %s17 = sphi 0, %s24
    %s18 = sphi 0, %s16
    %s19 = sphi 0, %s17
    %s20 = sphi 0, %s18
    %s21 = sphi 0, %s19
    %s29 = sphi 0, %s29
    %s31 = sphi 0, %s29
    %s32 = sphi 0, %s31
    %s46 = sphi 0, %s32
    %s54 = sphi 0, %s56
    %s57 = sphi 0, %s54
    %s58 = sphi 0, %s57
    %s74 = sphi 0, %s58
    %s82 = sphi 0, %s84
    %s85 = sphi 0, %s82
    %s86 = sphi 0, %s85
    %s102 = sphi 0, %s86
    %s110 = sphi 0, %s112
    %s113 = sphi 0, %s110
    %s114 = sphi 0, %s113
    %s130 = sphi 0, %s114
  $region4: #{medicalnet_perceptual_similarity.1} parent=0 // loop_header_branch
    %12 = sbr.rel (%p10) target = $region8
  $region5: #{medicalnet_perceptual_similarity.1} parent=0 // loop_body
    %s14 = ssub.s32 %s9, 1
    %s15 = ssub.s32 %s9, 2
    %s22 = sadd.s32 1, %s17
    %p23 = scmp.ge.s32.totalorder %s22, 1
    %s24 = scalar_select %p23, 0, %s22
    %s25 = sadd.s32 1, %s16
    %s26 = scalar_select %p23, %s25, %s16
    %p27 = scmp.ge.s32.totalorder %s26, 2
    %s28 = scalar_select %p27, 0, %s26
    %s30 = sadd.s32 %s29, 1
    %p33 = scmp.eq.s32.totalorder %s9, 1
    %p34 = scmp.ne.s32.totalorder %s29, %s31
    %p35 = scmp.eq.s32.totalorder %s9, 0
    %p36 = por %p34, %p35
    %p37 = scmp.ne.s32.totalorder %s29, %s31
    %p38 = scmp.eq.s32.totalorder %s14, 1
    %p39 = por %p37, %p38
    %p40 = scmp.ne.s32.totalorder %s31, %s32
    %p41 = scmp.eq.s32.totalorder %s14, 0
    %p42 = por %p40, %p41
    %p43 = scmp.ne.s32.totalorder %s31, %s32
    %p44 = scmp.eq.s32.totalorder %s15, 1
    %p45 = por %p43, %p44
    %p47 = scmp.ne.s32.totalorder %s32, %s46
    %p48 = scmp.eq.s32.totalorder %s15, 0
    %p49 = por %p47, %p48
    %s50 = ssub.s32 %s16, %s28
    %s51 = ssub.s32 %s17, %s24
    %s52 = sor.u32 %s50, %s51
    %p53 = scmp.eq.s32.totalorder %s52, 0
    %s55 = sadd.s32 %s54, 1
    %s56 = scalar_select %p53, %s54, %s55
    %p59 = pneg %p53
    %p60 = scmp.eq.s32.totalorder %s9, 1
    %p61 = por %p59, %p60
    %p62 = scmp.ne.s32.totalorder %s54, %s57
    %p63 = scmp.eq.s32.totalorder %s9, 0
    %p64 = por %p62, %p63
    %p65 = scmp.ne.s32.totalorder %s54, %s57
    %p66 = scmp.eq.s32.totalorder %s14, 1
    %p67 = por %p65, %p66
    %p68 = scmp.ne.s32.totalorder %s57, %s58
    %p69 = scmp.eq.s32.totalorder %s14, 0
    %p70 = por %p68, %p69
    %p71 = scmp.ne.s32.totalorder %s57, %s58
    %p72 = scmp.eq.s32.totalorder %s15, 1
    %p73 = por %p71, %p72
    %p75 = scmp.ne.s32.totalorder %s58, %s74
    %p76 = scmp.eq.s32.totalorder %s15, 0
    %p77 = por %p75, %p76
    %s78 = ssub.s32 %s16, %s28
    %s79 = ssub.s32 %s17, %s24
    %s80 = sor.u32 %s78, %s79
    %p81 = scmp.eq.s32.totalorder %s80, 0
    %s83 = sadd.s32 %s82, 1
    %s84 = scalar_select %p81, %s82, %s83
    %p87 = pneg %p81
    %p88 = scmp.eq.s32.totalorder %s9, 1
    %p89 = por %p87, %p88
    %p90 = scmp.ne.s32.totalorder %s82, %s85
    %p91 = scmp.eq.s32.totalorder %s9, 0
    %p92 = por %p90, %p91
    %p93 = scmp.ne.s32.totalorder %s82, %s85
    %p94 = scmp.eq.s32.totalorder %s14, 1
    %p95 = por %p93, %p94
    %p96 = scmp.ne.s32.totalorder %s85, %s86
    %p97 = scmp.eq.s32.totalorder %s14, 0
    %p98 = por %p96, %p97
    %p99 = scmp.ne.s32.totalorder %s85, %s86
    %p100 = scmp.eq.s32.totalorder %s15, 1
    %p101 = por %p99, %p100
    %p103 = scmp.ne.s32.totalorder %s86, %s102
    %p104 = scmp.eq.s32.totalorder %s15, 0
    %p105 = por %p103, %p104
    %s106 = ssub.s32 %s16, %s28
    %s107 = ssub.s32 %s17, %s24
    %s108 = sor.u32 %s106, %s107
    %p109 = scmp.eq.s32.totalorder %s108, 0
    %s111 = sadd.s32 %s110, 1
    %s112 = scalar_select %p109, %s110, %s111
    %p115 = pneg %p109
    %p116 = scmp.eq.s32.totalorder %s9, 1
    %p117 = por %p115, %p116
    %p118 = scmp.ne.s32.totalorder %s110, %s113
    %p119 = scmp.eq.s32.totalorder %s9, 0
    %p120 = por %p118, %p119
    %p121 = scmp.ne.s32.totalorder %s110, %s113
    %p122 = scmp.eq.s32.totalorder %s14, 1
    %p123 = por %p121, %p122
    %p124 = scmp.ne.s32.totalorder %s113, %s114
    %p125 = scmp.eq.s32.totalorder %s14, 0
    %p126 = por %p124, %p125
    %p127 = scmp.ne.s32.totalorder %s113, %s114
    %p128 = scmp.eq.s32.totalorder %s15, 1
    %p129 = por %p127, %p128
    %p131 = scmp.ne.s32.totalorder %s114, %s130
    %p132 = scmp.eq.s32.totalorder %s15, 0
    %p133 = por %p131, %p132
    %p134 = scmp.le.s32.totalorder 1, %s9
    %p135 = scmp.lt.s32.totalorder %s9, 3
    %p136 = pnand %p134, %p135
    %p137 = pneg %p136
    // Predicated region
    $region9: #{medicalnet_perceptual_similarity.1} parent=5 // pred_check
      _
    $region10: #{medicalnet_perceptual_similarity.1} parent=5 // pred_check_branch
      %139 = sbr.rel (%p136) target = $region12
    $region11: #{medicalnet_perceptual_similarity.1} parent=5 // pred_region
      %s140 = ssub.s32 %s9, 1
      // Predicated region
      $region13: #{medicalnet_perceptual_similarity.1} parent=11 // pred_check
        %p141 = pneg %p42
      $region14: #{medicalnet_perceptual_similarity.1} parent=11 // pred_check_branch
        %143 = sbr.rel (%p141) target = $region16
      $region15: #{medicalnet_perceptual_similarity.1} parent=11 // pred_region
        _
      $region16: #{medicalnet_perceptual_similarity.1} parent=11 // pred_fallthru
        _
    $region12: #{medicalnet_perceptual_similarity.1} parent=5 // pred_fallthru
      _
    %p144 = scmp.lt.s32.totalorder %s9, 2
    // Predicated region
    $region17: #{medicalnet_perceptual_similarity.1} parent=5 // pred_check
      %p145 = pneg %p144
    $region18: #{medicalnet_perceptual_similarity.1} parent=5 // pred_check_branch
      %147 = sbr.rel (%p145) target = $region20
    $region19: #{medicalnet_perceptual_similarity.1} parent=5 // pred_region
      // Predicated region
      $region21: #{medicalnet_perceptual_similarity.1} parent=19 // pred_check
        %p148 = pneg %p64
      $region22: #{medicalnet_perceptual_similarity.1} parent=19 // pred_check_branch
        %150 = sbr.rel (%p148) target = $region24
      $region23: #{medicalnet_perceptual_similarity.1} parent=19 // pred_region
        %s151 = smul.u32 4, %s17
        %p152 = scmp.lt.s32.totalorder %s16, 1
        %s153 = scalar_select %p152, %s16, 1
        %p154 = scmp.lt.s32.totalorder %s151, 3
        %s155 = scalar_select %p154, %s151, 3
        %s156 = smul.addr %s153, 16
        %s157 = sadd.s32 %s155, %s156
        %s158 = smul.addr %s157, 4
        %s159 = scalar_lea.vmem %s1, %s158
        %s160 = smul.u32 4, %s17
      $region24: #{medicalnet_perceptual_similarity.1} parent=19 // pred_fallthru
        _
      // Predicated region
      $region25: #{medicalnet_perceptual_similarity.1} parent=19 // pred_check
        %p161 = pneg %p92
      $region26: #{medicalnet_perceptual_similarity.1} parent=19 // pred_check_branch
        %163 = sbr.rel (%p161) target = $region28
      $region27: #{medicalnet_perceptual_similarity.1} parent=19 // pred_region
        %s164 = smul.u32 4, %s17
        %p165 = scmp.lt.s32.totalorder %s16, 1
        %s166 = scalar_select %p165, %s16, 1
        %p167 = scmp.lt.s32.totalorder %s164, 3
        %s168 = scalar_select %p167, %s164, 3
        %s169 = smul.addr %s166, 16
        %s170 = sadd.s32 %s168, %s169
        %s171 = smul.addr %s170, 4
        %s172 = scalar_lea.vmem %s2, %s171
        %s173 = smul.u32 4, %s17
      $region28: #{medicalnet_perceptual_similarity.1} parent=19 // pred_fallthru
        _
    $region20: #{medicalnet_perceptual_similarity.1} parent=5 // pred_fallthru
      _
    %p174 = scmp.le.s32.totalorder 1, %s9
    %p175 = scmp.lt.s32.totalorder %s9, 3
    %p176 = pnand %p174, %p175
    %p177 = pneg %p176
    // Predicated region
    $region29: #{medicalnet_perceptual_similarity.1} parent=5 // pred_check
      _
    $region30: #{medicalnet_perceptual_similarity.1} parent=5 // pred_check_branch
      %179 = sbr.rel (%p176) target = $region32
    $region31: #{medicalnet_perceptual_similarity.1} parent=5 // pred_region
      %s180 = ssub.s32 %s9, 1
      %p181 = pneg %p42
      %p182 = pneg %p39
      %s183 = smul.u32 4, %s19
      %p184 = scmp.lt.s32.totalorder %s18, 1
      %s185 = scalar_select %p184, %s18, 1
      %p186 = scmp.lt.s32.totalorder %s183, 3
      %s187 = scalar_select %p186, %s183, 3
      %s188 = smul.addr %s185, 16
      %s189 = sadd.s32 %s187, %s188
      %s190 = smul.addr %s189, 4
      %s191 = scalar_lea.vmem %s1, %s190
      %p192 = pneg %p70
      %p193 = pneg %p67
      %s194 = smul.u32 4, %s19
      %p195 = scmp.lt.s32.totalorder %s18, 1
      %s196 = scalar_select %p195, %s18, 1
      %p197 = scmp.lt.s32.totalorder %s194, 3
      %s198 = scalar_select %p197, %s194, 3
      %s199 = smul.addr %s196, 16
      %s200 = sadd.s32 %s198, %s199
      %s201 = smul.addr %s200, 4
      %s202 = scalar_lea.vmem %s2, %s201
      %p203 = pneg %p98
      %p204 = pneg %p95
      %p205 = pneg %p126
      %p206 = pneg %p123
      %s207 = smul.u32 4, %s19
      %p208 = scmp.lt.s32.totalorder %s18, 1
      %s209 = scalar_select %p208, %s18, 1
      %p210 = scmp.lt.s32.totalorder %s207, 3
      %s211 = scalar_select %p210, %s207, 3
      %s212 = smul.addr %s209, 4
      %s213 = sadd.s32 %s211, %s212
      %s214 = scalar_lea.vmem %s3, %s213
      %s215 = smul.u32 4, %s19
      %p216 = scmp.lt.s32.totalorder %s18, 1
      %s217 = scalar_select %p216, %s18, 1
      %p218 = scmp.lt.s32.totalorder %s215, 3
      %s219 = scalar_select %p218, %s215, 3
      %s220 = smul.addr %s217, 16
      %s221 = sadd.s32 %s219, %s220
      %s222 = smul.addr %s221, 4
      %s223 = scalar_lea.vmem %s1, %s222
      %s224 = smul.u32 4, %s19
      %s225 = smul.u32 4, %s19
      %p226 = scmp.lt.s32.totalorder %s18, 1
      %s227 = scalar_select %p226, %s18, 1
      %p228 = scmp.lt.s32.totalorder %s225, 3
      %s229 = scalar_select %p228, %s225, 3
      %s230 = smul.addr %s227, 16
      %s231 = sadd.s32 %s229, %s230
      %s232 = smul.addr %s231, 4
      %s233 = scalar_lea.vmem %s2, %s232
      %s234 = smul.u32 4, %s19
      %s235 = smul.u32 4, %s19
      %p236 = scmp.lt.s32.totalorder %s18, 1
      %s237 = scalar_select %p236, %s18, 1
      %p238 = scmp.lt.s32.totalorder %s235, 3
      %s239 = scalar_select %p238, %s235, 3
      %s240 = smul.addr %s237, 4
      %s241 = sadd.s32 %s239, %s240
      %s242 = scalar_lea.vmem %s3, %s241
      %s243 = smul.u32 4, %s19
      %v245 = vld [vmem:[%s0] sm:$0xf]
      %v246 = vld [vmem:[%s0 + $0x4] sm:$0xf]
      %v247 = vld [vmem:[%s223] sm:$0xff]
      %v248 = vld [vmem:[%s223 + $0x8] sm:$0xff]
      %v249 = vld [vmem:[%s223 + $0x10] sm:$0xff]
      %v250 = vld [vmem:[%s223 + $0x18] sm:$0xff]
      %v251 = vld [vmem:[%s223 + $0x20] sm:$0xff]
      %v252 = vld [vmem:[%s223 + $0x28] sm:$0xff]
      %v253 = vld [vmem:[%s223 + $0x30] sm:$0x33]
      %v254 = vld [vmem:[%s223 + $0x38] sm:$0x33]
      %v257 = vunpack.c.l.b16 %v245
      %v258 = vunpack.c.l.b16 %v246
      %v259 = vpack.c.b16 %v258, %v257
      %v268 = vunpack.c.l.b16 %v247
      %v269 = vunpack.c.h.b16 %v247
      %v270 = vunpack.c.l.b16 %v248
      %v271 = vunpack.c.h.b16 %v248
      %v272 = vunpack.c.l.b16 %v249
      %v273 = vunpack.c.h.b16 %v249
      %v274 = vunpack.c.l.b16 %v250
      %v275 = vunpack.c.h.b16 %v250
      %v276 = vunpack.c.l.b16 %v251
      %v277 = vunpack.c.h.b16 %v251
      %v278 = vunpack.c.l.b16 %v252
      %v279 = vunpack.c.h.b16 %v252
      %v280 = vunpack.c.l.b16 %v253
      %v281 = vunpack.c.h.b16 %v253
      %v282 = vunpack.c.l.b16 %v254
      %v283 = vunpack.c.h.b16 %v254
      %v284 = vpack.c.b16 %v272, %v268
      %v285 = vpack.c.b16 %v273, %v269
      %v286 = vpack.c.b16 %v274, %v270
      %v287 = vpack.c.b16 %v275, %v271
      %v288 = vpack.c.b16 %v280, %v276
      %v289 = vpack.c.b16 %v281, %v277
      %v290 = vpack.c.b16 %v282, %v278
      %v291 = vpack.c.b16 %v283, %v279
      %vm296 = vcmask 220160
      %v298 = vsel %vm296, %v259, 0
      %vm300 = vcmask 1044480
      %vm301 = vcmask 1045504
      %v302 = vsel %vm300, 4294967295, 65535
      %v303 = vsel %vm301, %v302, 0
      %v305 = vand.u32 %v288, %v303
      %v308 = vand.u32 %v289, %v303
      %v311 = vand.u32 %v290, %v303
      %v314 = vand.u32 %v291, %v303
      %316 = vmatprep.subr.bf16.mxu0 %v285
      %317 = vmatpush1.bf16.msra.mxu0 %v284
      %318 = vmatprep.subr.bf16.mxu0 %v308
      %319 = vmatpush1.bf16.msra.mxu0 %v305
      %320 = vmatprep.subr.bf16.mxu0 0
      %321 = vmatpush1.bf16.msra.mxu0 0
      %322 = vmatprep.subr.bf16.mxu0 0
      %323 = vmatpush1.bf16.msra.mxu0 0
      %324 = vmatprep.subr.bf16.mxu0 0
      %325 = vmatpush1.bf16.msra.mxu0 0
      %326 = vmatprep.subr.bf16.mxu0 0
      %327 = vmatpush1.bf16.msra.mxu0 0
      %328 = vmatprep.subr.bf16.mxu0 0
      %329 = vmatpush1.bf16.msra.mxu0 0
      %330 = vmatprep.subr.bf16.mxu0 0
      %331 = vmatpush1.bf16.msra.mxu0 0
      %332 = vmatprep.subr.bf16.mxu0 0
      %333 = vmatpush1.bf16.msra.mxu0 0
      %334 = vmatprep.subr.bf16.mxu0 0
      %335 = vmatpush1.bf16.msra.mxu0 0
      %336 = vmatprep.subr.bf16.mxu0 0
      %337 = vmatpush1.bf16.msra.mxu0 0
      %338 = vmatprep.subr.bf16.mxu0 0
      %339 = vmatpush1.bf16.msra.mxu0 0
      %340 = vmatprep.subr.bf16.mxu0 0
      %341 = vmatpush1.bf16.msra.mxu0 0
      %342 = vmatprep.subr.bf16.mxu0 0
      %343 = vmatpush1.bf16.msra.mxu0 0
      %344 = vmatprep.subr.bf16.mxu0 0
      %345 = vmatpush1.bf16.msra.mxu0 0
      %346 = vmatprep.subr.bf16.mxu0 0
      %347 = vmatpush1.bf16.msra.mxu0 0
      %348 = vmatprep.mubr.bf16.mxu0 0
      %349 = vmatmul.mubr.bf16.gmra.mrb[0].mxu0 %v298
      %v350 = vpop.f32.mrb[0].mxu0
      %v351 = vadd.f32 0.0, %v350
      %v352 = vpop.f32.mrb[0].mxu0
      %v353 = vadd.f32 0.0, %v352
      %v354 = vpop.f32.mrb[0].mxu0
      %v355 = vadd.f32 0.0, %v354
      %v356 = vpop.f32.mrb[0].mxu0
      %v357 = vadd.f32 0.0, %v356
      %358 = vdwg.mxu0
      %359 = vmatprep.subr.bf16.mxu0 %v287
      %360 = vmatpush1.bf16.msra.mxu0 %v286
      %361 = vmatprep.subr.bf16.mxu0 %v314
      %362 = vmatpush1.bf16.msra.mxu0 %v311
      %363 = vmatprep.subr.bf16.mxu0 0
      %364 = vmatpush1.bf16.msra.mxu0 0
      %365 = vmatprep.subr.bf16.mxu0 0
      %366 = vmatpush1.bf16.msra.mxu0 0
      %367 = vmatprep.subr.bf16.mxu0 0
      %368 = vmatpush1.bf16.msra.mxu0 0
      %369 = vmatprep.subr.bf16.mxu0 0
      %370 = vmatpush1.bf16.msra.mxu0 0
      %371 = vmatprep.subr.bf16.mxu0 0
      %372 = vmatpush1.bf16.msra.mxu0 0
      %373 = vmatprep.subr.bf16.mxu0 0
      %374 = vmatpush1.bf16.msra.mxu0 0
      %375 = vmatprep.subr.bf16.mxu0 0
      %376 = vmatpush1.bf16.msra.mxu0 0
      %377 = vmatprep.subr.bf16.mxu0 0
      %378 = vmatpush1.bf16.msra.mxu0 0
      %379 = vmatprep.subr.bf16.mxu0 0
      %380 = vmatpush1.bf16.msra.mxu0 0
      %381 = vmatprep.subr.bf16.mxu0 0
      %382 = vmatpush1.bf16.msra.mxu0 0
      %383 = vmatprep.subr.bf16.mxu0 0
      %384 = vmatpush1.bf16.msra.mxu0 0
      %385 = vmatprep.subr.bf16.mxu0 0
      %386 = vmatpush1.bf16.msra.mxu0 0
      %387 = vmatprep.subr.bf16.mxu0 0
      %388 = vmatpush1.bf16.msra.mxu0 0
      %389 = vmatprep.subr.bf16.mxu0 0
      %390 = vmatpush1.bf16.msra.mxu0 0
      %391 = vmatprep.mubr.bf16.mxu0 0
      %392 = vmatmul.mubr.bf16.gmra.mrb[0].mxu0 %v298
      %v393 = vpop.f32.mrb[0].mxu0
      %v394 = vadd.f32 0.0, %v393
      %v395 = vpop.f32.mrb[0].mxu0
      %v396 = vadd.f32 0.0, %v395
      %v397 = vpop.f32.mrb[0].mxu0
      %v398 = vadd.f32 0.0, %v397
      %v399 = vpop.f32.mrb[0].mxu0
      %v400 = vadd.f32 0.0, %v399
      %401 = vdwg.mxu0
      %v402 = vmax.f32 %v351, 0.0
      %v403 = vmax.f32 %v353, 0.0
      %v404 = vmax.f32 %v394, 0.0
      %v405 = vmax.f32 %v396, 0.0
      %v406 = vmax.f32 %v355, 0.0
      %v407 = vmax.f32 %v357, 0.0
      %v408 = vmax.f32 %v398, 0.0
      %v409 = vmax.f32 %v400, 0.0
      %v410 = vld [vmem:[%s233] sm:$0xff]
      %v411 = vld [vmem:[%s233 + $0x8] sm:$0xff]
      %v412 = vld [vmem:[%s233 + $0x10] sm:$0xff]
      %v413 = vld [vmem:[%s233 + $0x18] sm:$0xff]
      %v414 = vld [vmem:[%s233 + $0x20] sm:$0xff]
      %v415 = vld [vmem:[%s233 + $0x28] sm:$0xff]
      %v416 = vld [vmem:[%s233 + $0x30] sm:$0x33]
      %v417 = vld [vmem:[%s233 + $0x38] sm:$0x33]
      %v426 = vunpack.c.l.b16 %v410
      %v427 = vunpack.c.h.b16 %v410
      %v428 = vunpack.c.l.b16 %v411
      %v429 = vunpack.c.h.b16 %v411
      %v430 = vunpack.c.l.b16 %v412
      %v431 = vunpack.c.h.b16 %v412
      %v432 = vunpack.c.l.b16 %v413
      %v433 = vunpack.c.h.b16 %v413
      %v434 = vunpack.c.l.b16 %v414
      %v435 = vunpack.c.h.b16 %v414
      %v436 = vunpack.c.l.b16 %v415
      %v437 = vunpack.c.h.b16 %v415
      %v438 = vunpack.c.l.b16 %v416
      %v439 = vunpack.c.h.b16 %v416
      %v440 = vunpack.c.l.b16 %v417
      %v441 = vunpack.c.h.b16 %v417
      %v442 = vpack.c.b16 %v430, %v426
      %v443 = vpack.c.b16 %v431, %v427
      %v444 = vpack.c.b16 %v432, %v428
      %v445 = vpack.c.b16 %v433, %v429
      %v446 = vpack.c.b16 %v438, %v434
      %v447 = vpack.c.b16 %v439, %v435
      %v448 = vpack.c.b16 %v440, %v436
      %v449 = vpack.c.b16 %v441, %v437
      %v455 = vand.u32 %v446, %v303
      %v458 = vand.u32 %v447, %v303
      %v461 = vand.u32 %v448, %v303
      %v464 = vand.u32 %v449, %v303
      %466 = vmatprep.subr.bf16.mxu0 %v443
      %467 = vmatpush1.bf16.msra.mxu0 %v442
      %468 = vmatprep.subr.bf16.mxu0 %v458
      %469 = vmatpush1.bf16.msra.mxu0 %v455
      %470 = vmatprep.subr.bf16.mxu0 0
      %471 = vmatpush1.bf16.msra.mxu0 0
      %472 = vmatprep.subr.bf16.mxu0 0
      %473 = vmatpush1.bf16.msra.mxu0 0
      %474 = vmatprep.subr.bf16.mxu0 0
      %475 = vmatpush1.bf16.msra.mxu0 0
      %476 = vmatprep.subr.bf16.mxu0 0
      %477 = vmatpush1.bf16.msra.mxu0 0
      %478 = vmatprep.subr.bf16.mxu0 0
      %479 = vmatpush1.bf16.msra.mxu0 0
      %480 = vmatprep.subr.bf16.mxu0 0
      %481 = vmatpush1.bf16.msra.mxu0 0
      %482 = vmatprep.subr.bf16.mxu0 0
      %483 = vmatpush1.bf16.msra.mxu0 0
      %484 = vmatprep.subr.bf16.mxu0 0
      %485 = vmatpush1.bf16.msra.mxu0 0
      %486 = vmatprep.subr.bf16.mxu0 0
      %487 = vmatpush1.bf16.msra.mxu0 0
      %488 = vmatprep.subr.bf16.mxu0 0
      %489 = vmatpush1.bf16.msra.mxu0 0
      %490 = vmatprep.subr.bf16.mxu0 0
      %491 = vmatpush1.bf16.msra.mxu0 0
      %492 = vmatprep.subr.bf16.mxu0 0
      %493 = vmatpush1.bf16.msra.mxu0 0
      %494 = vmatprep.subr.bf16.mxu0 0
      %495 = vmatpush1.bf16.msra.mxu0 0
      %496 = vmatprep.subr.bf16.mxu0 0
      %497 = vmatpush1.bf16.msra.mxu0 0
      %498 = vmatprep.mubr.bf16.mxu0 0
      %499 = vmatmul.mubr.bf16.gmra.mrb[0].mxu0 %v298
      %v500 = vpop.f32.mrb[0].mxu0
      %v501 = vadd.f32 0.0, %v500
      %v502 = vpop.f32.mrb[0].mxu0
      %v503 = vadd.f32 0.0, %v502
      %v504 = vpop.f32.mrb[0].mxu0
      %v505 = vadd.f32 0.0, %v504
      %v506 = vpop.f32.mrb[0].mxu0
      %v507 = vadd.f32 0.0, %v506
      %508 = vdwg.mxu0
      %509 = vmatprep.subr.bf16.mxu0 %v445
      %510 = vmatpush1.bf16.msra.mxu0 %v444
      %511 = vmatprep.subr.bf16.mxu0 %v464
      %512 = vmatpush1.bf16.msra.mxu0 %v461
      %513 = vmatprep.subr.bf16.mxu0 0
      %514 = vmatpush1.bf16.msra.mxu0 0
      %515 = vmatprep.subr.bf16.mxu0 0
      %516 = vmatpush1.bf16.msra.mxu0 0
      %517 = vmatprep.subr.bf16.mxu0 0
      %518 = vmatpush1.bf16.msra.mxu0 0
      %519 = vmatprep.subr.bf16.mxu0 0
      %520 = vmatpush1.bf16.msra.mxu0 0
      %521 = vmatprep.subr.bf16.mxu0 0
      %522 = vmatpush1.bf16.msra.mxu0 0
      %523 = vmatprep.subr.bf16.mxu0 0
      %524 = vmatpush1.bf16.msra.mxu0 0
      %525 = vmatprep.subr.bf16.mxu0 0
      %526 = vmatpush1.bf16.msra.mxu0 0
      %527 = vmatprep.subr.bf16.mxu0 0
      %528 = vmatpush1.bf16.msra.mxu0 0
      %529 = vmatprep.subr.bf16.mxu0 0
      %530 = vmatpush1.bf16.msra.mxu0 0
      %531 = vmatprep.subr.bf16.mxu0 0
      %532 = vmatpush1.bf16.msra.mxu0 0
      %533 = vmatprep.subr.bf16.mxu0 0
      %534 = vmatpush1.bf16.msra.mxu0 0
      %535 = vmatprep.subr.bf16.mxu0 0
      %536 = vmatpush1.bf16.msra.mxu0 0
      %537 = vmatprep.subr.bf16.mxu0 0
      %538 = vmatpush1.bf16.msra.mxu0 0
      %539 = vmatprep.subr.bf16.mxu0 0
      %540 = vmatpush1.bf16.msra.mxu0 0
      %541 = vmatprep.mubr.bf16.mxu0 0
      %542 = vmatmul.mubr.bf16.gmra.mrb[0].mxu0 %v298
      %v543 = vpop.f32.mrb[0].mxu0
      %v544 = vadd.f32 0.0, %v543
      %v545 = vpop.f32.mrb[0].mxu0
      %v546 = vadd.f32 0.0, %v545
      %v547 = vpop.f32.mrb[0].mxu0
      %v548 = vadd.f32 0.0, %v547
      %v549 = vpop.f32.mrb[0].mxu0
      %v550 = vadd.f32 0.0, %v549
      %551 = vdwg.mxu0
      %v552 = vmax.f32 %v501, 0.0
      %v553 = vmax.f32 %v503, 0.0
      %v554 = vmax.f32 %v544, 0.0
      %v555 = vmax.f32 %v546, 0.0
      %v556 = vmax.f32 %v505, 0.0
      %v557 = vmax.f32 %v507, 0.0
      %v558 = vmax.f32 %v548, 0.0
      %v559 = vmax.f32 %v550, 0.0
      %v560 = vmul.f32 %v402, %v402
      %v561 = vmul.f32 %v403, %v403
      %v562 = vmul.f32 %v404, %v404
      %v563 = vmul.f32 %v405, %v405
      %v564 = vmul.f32 %v406, %v406
      %v565 = vmul.f32 %v407, %v407
      %v566 = vmul.f32 %v408, %v408
      %v567 = vmul.f32 %v409, %v409
      %v568 = vadd.f32 %v560, %v564
      %v569 = vrot.slane %v568, 4
      %v570 = vadd.f32 %v568, %v569
      %v571 = vrot.slane %v570, 2
      %v572 = vadd.f32 %v570, %v571
      %v573 = vrot.slane %v572, 1
      %v574 = vadd.f32 %v572, %v573
      %v575 = vadd.f32 %v561, %v565
      %v576 = vrot.slane %v575, 4
      %v577 = vadd.f32 %v575, %v576
      %v578 = vrot.slane %v577, 2
      %v579 = vadd.f32 %v577, %v578
      %v580 = vrot.slane %v579, 1
      %v581 = vadd.f32 %v579, %v580
      %v582 = vadd.f32 %v562, %v566
      %v583 = vrot.slane %v582, 4
      %v584 = vadd.f32 %v582, %v583
      %v585 = vrot.slane %v584, 2
      %v586 = vadd.f32 %v584, %v585
      %v587 = vrot.slane %v586, 1
      %v588 = vadd.f32 %v586, %v587
      %v589 = vadd.f32 %v563, %v567
      %v590 = vrot.slane %v589, 4
      %v591 = vadd.f32 %v589, %v590
      %v592 = vrot.slane %v591, 2
      %v593 = vadd.f32 %v591, %v592
      %v594 = vrot.slane %v593, 1
      %v595 = vadd.f32 %v593, %v594
      %v596 = vmul.f32 %v552, %v552
      %v597 = vmul.f32 %v553, %v553
      %v598 = vmul.f32 %v554, %v554
      %v599 = vmul.f32 %v555, %v555
      %v600 = vmul.f32 %v556, %v556
      %v601 = vmul.f32 %v557, %v557
      %v602 = vmul.f32 %v558, %v558
      %v603 = vmul.f32 %v559, %v559
      %v604 = vadd.f32 %v596, %v600
      %v605 = vrot.slane %v604, 4
      %v606 = vadd.f32 %v604, %v605
      %v607 = vrot.slane %v606, 2
      %v608 = vadd.f32 %v606, %v607
      %v609 = vrot.slane %v608, 1
      %v610 = vadd.f32 %v608, %v609
      %v611 = vadd.f32 %v597, %v601
      %v612 = vrot.slane %v611, 4
      %v613 = vadd.f32 %v611, %v612
      %v614 = vrot.slane %v613, 2
      %v615 = vadd.f32 %v613, %v614
      %v616 = vrot.slane %v615, 1
      %v617 = vadd.f32 %v615, %v616
      %v618 = vadd.f32 %v598, %v602
      %v619 = vrot.slane %v618, 4
      %v620 = vadd.f32 %v618, %v619
      %v621 = vrot.slane %v620, 2
      %v622 = vadd.f32 %v620, %v621
      %v623 = vrot.slane %v622, 1
      %v624 = vadd.f32 %v622, %v623
      %v625 = vadd.f32 %v599, %v603
      %v626 = vrot.slane %v625, 4
      %v627 = vadd.f32 %v625, %v626
      %v628 = vrot.slane %v627, 2
      %v629 = vadd.f32 %v627, %v628
      %v630 = vrot.slane %v629, 1
      %v631 = vadd.f32 %v629, %v630
      %v632 = vmul.f32 %v402, %v552
      %v633 = vmul.f32 %v403, %v553
      %v634 = vmul.f32 %v404, %v554
      %v635 = vmul.f32 %v405, %v555
      %v636 = vmul.f32 %v406, %v556
      %v637 = vmul.f32 %v407, %v557
      %v638 = vmul.f32 %v408, %v558
      %v639 = vmul.f32 %v409, %v559
      %v640 = vadd.f32 %v632, %v636
      %v641 = vrot.slane %v640, 4
      %v642 = vadd.f32 %v640, %v641
      %v643 = vrot.slane %v642, 2
      %v644 = vadd.f32 %v642, %v643
      %v645 = vrot.slane %v644, 1
      %v646 = vadd.f32 %v644, %v645
      %v647 = vadd.f32 %v633, %v637
      %v648 = vrot.slane %v647, 4
      %v649 = vadd.f32 %v647, %v648
      %v650 = vrot.slane %v649, 2
      %v651 = vadd.f32 %v649, %v650
      %v652 = vrot.slane %v651, 1
      %v653 = vadd.f32 %v651, %v652
      %v654 = vadd.f32 %v634, %v638
      %v655 = vrot.slane %v654, 4
      %v656 = vadd.f32 %v654, %v655
      %v657 = vrot.slane %v656, 2
      %v658 = vadd.f32 %v656, %v657
      %v659 = vrot.slane %v658, 1
      %v660 = vadd.f32 %v658, %v659
      %v661 = vadd.f32 %v635, %v639
      %v662 = vrot.slane %v661, 4
      %v663 = vadd.f32 %v661, %v662
      %v664 = vrot.slane %v663, 2
      %v665 = vadd.f32 %v663, %v664
      %v666 = vrot.slane %v665, 1
      %v667 = vadd.f32 %v665, %v666
      %v668 = vrsqrt.pop %v574
      %v669 = vmul.f32 %v574, %v668
      %vm670 = vcmp.eq.f32.partialorder %v574, inf
      %v671 = vsel %vm670, %v574, %v669
      %vm672 = vcmp.eq.f32.partialorder %v574, 0.0
      %v673 = vand.u32 %v574, 2147483648
      %v674 = vsel %vm672, %v673, %v671
      %v675 = vrsqrt.pop %v581
      %v676 = vmul.f32 %v581, %v675
      %vm677 = vcmp.eq.f32.partialorder %v581, inf
      %v678 = vsel %vm677, %v581, %v676
      %vm679 = vcmp.eq.f32.partialorder %v581, 0.0
      %v680 = vand.u32 %v581, 2147483648
      %v681 = vsel %vm679, %v680, %v678
      %v682 = vrsqrt.pop %v588
      %v683 = vmul.f32 %v588, %v682
      %vm684 = vcmp.eq.f32.partialorder %v588, inf
      %v685 = vsel %vm684, %v588, %v683
      %vm686 = vcmp.eq.f32.partialorder %v588, 0.0
      %v687 = vand.u32 %v588, 2147483648
      %v688 = vsel %vm686, %v687, %v685
      %v689 = vrsqrt.pop %v595
      %v690 = vmul.f32 %v595, %v689
      %vm691 = vcmp.eq.f32.partialorder %v595, inf
      %v692 = vsel %vm691, %v595, %v690
      %vm693 = vcmp.eq.f32.partialorder %v595, 0.0
      %v694 = vand.u32 %v595, 2147483648
      %v695 = vsel %vm693, %v694, %v692
      %v696 = vadd.f32 %v674, 1e-10
      %v697 = vadd.f32 %v681, 1e-10
      %v698 = vadd.f32 %v688, 1e-10
      %v699 = vadd.f32 %v695, 1e-10
      %v700 = vrcp.pop %v696
      %v701 = vrcp.pop %v697
      %v702 = vrcp.pop %v698
      %v703 = vrcp.pop %v699
      %v704 = vrsqrt.pop %v610
      %v705 = vmul.f32 %v610, %v704
      %vm706 = vcmp.eq.f32.partialorder %v610, inf
      %v707 = vsel %vm706, %v610, %v705
      %vm708 = vcmp.eq.f32.partialorder %v610, 0.0
      %v709 = vand.u32 %v610, 2147483648
      %v710 = vsel %vm708, %v709, %v707
      %v711 = vrsqrt.pop %v617
      %v712 = vmul.f32 %v617, %v711
      %vm713 = vcmp.eq.f32.partialorder %v617, inf
      %v714 = vsel %vm713, %v617, %v712
      %vm715 = vcmp.eq.f32.partialorder %v617, 0.0
      %v716 = vand.u32 %v617, 2147483648
      %v717 = vsel %vm715, %v716, %v714
      %v718 = vrsqrt.pop %v624
      %v719 = vmul.f32 %v624, %v718
      %vm720 = vcmp.eq.f32.partialorder %v624, inf
      %v721 = vsel %vm720, %v624, %v719
      %vm722 = vcmp.eq.f32.partialorder %v624, 0.0
      %v723 = vand.u32 %v624, 2147483648
      %v724 = vsel %vm722, %v723, %v721
      %v725 = vrsqrt.pop %v631
      %v726 = vmul.f32 %v631, %v725
      %vm727 = vcmp.eq.f32.partialorder %v631, inf
      %v728 = vsel %vm727, %v631, %v726
      %vm729 = vcmp.eq.f32.partialorder %v631, 0.0
      %v730 = vand.u32 %v631, 2147483648
      %v731 = vsel %vm729, %v730, %v728
      %v732 = vadd.f32 %v710, 1e-10
      %v733 = vadd.f32 %v717, 1e-10
      %v734 = vadd.f32 %v724, 1e-10
      %v735 = vadd.f32 %v731, 1e-10
      %v736 = vrcp.pop %v732
      %v737 = vrcp.pop %v733
      %v738 = vrcp.pop %v734
      %v739 = vrcp.pop %v735
      %v740 = vmul.f32 %v700, %v700
      %v741 = vmul.f32 %v701, %v701
      %v742 = vmul.f32 %v702, %v702
      %v743 = vmul.f32 %v703, %v703
      %v744 = vmul.f32 %v574, %v740
      %v745 = vmul.f32 %v581, %v741
      %v746 = vmul.f32 %v588, %v742
      %v747 = vmul.f32 %v595, %v743
      %v748 = vmul.f32 %v736, %v736
      %v749 = vmul.f32 %v737, %v737
      %v750 = vmul.f32 %v738, %v738
      %v751 = vmul.f32 %v739, %v739
      %v752 = vmul.f32 %v610, %v748
      %v753 = vmul.f32 %v617, %v749
      %v754 = vmul.f32 %v624, %v750
      %v755 = vmul.f32 %v631, %v751
      %v756 = vadd.f32 %v744, %v752
      %v757 = vadd.f32 %v745, %v753
      %v758 = vadd.f32 %v746, %v754
      %v759 = vadd.f32 %v747, %v755
      %v760 = vmul.f32 %v646, 2.0
      %v761 = vmul.f32 %v653, 2.0
      %v762 = vmul.f32 %v660, 2.0
      %v763 = vmul.f32 %v667, 2.0
      %v764 = vmul.f32 %v700, %v736
      %v765 = vmul.f32 %v701, %v737
      %v766 = vmul.f32 %v702, %v738
      %v767 = vmul.f32 %v703, %v739
      %v768 = vmul.f32 %v760, %v764
      %v769 = vmul.f32 %v761, %v765
      %v770 = vmul.f32 %v762, %v766
      %v771 = vmul.f32 %v763, %v767
      %v772 = vsub.f32 %v756, %v768
      %v773 = vsub.f32 %v757, %v769
      %v774 = vsub.f32 %v758, %v770
      %v775 = vsub.f32 %v759, %v771
      %v780 = vcombine.low %v772, %v773
      %v781 = vcombine.low %v774, %v775
      %v783 = vunpack.c.l.s4 1966171168
      %v784 = vunpack.c.0.s8 %v783
      %v785 = vlaneseq
      %v786 = vshrl.u32 %v785, 7
      %v787 = vsub.s32 %v784, %v786
      %v788 = vrot.slane %v780, %v787
      %v790 = vunpack.c.l.s4 1966171168
      %v791 = vunpack.c.0.s8 %v790
      %v792 = vlaneseq
      %v793 = vshrl.u32 %v792, 7
      %v794 = vsub.s32 %v791, %v793
      %v795 = vrot.slane %v781, %v794
      %v796 = vcombine.low %v788, %v795
      %v798 = vunpack.c.l.s4 1966171168
      %v799 = vunpack.c.0.s8 %v798
      %v800 = vlaneseq
      %v801 = vshrl.u32 %v800, 7
      %v802 = vsub.s32 %v799, %v801
      %v803 = vrot.slane %v796, %v802
      %v805 = vlaneseq
      %vm806 = vcmp.ge.s32.totalorder %v805, 0
      %vm807 = vcmp.lt.s32.totalorder %v805, 512
      %vm808 = vmand %vm806, %vm807
      %809 = vst.msk [vmem:[%s242] sm:$0xf] %vm808, %v803
      %s810 = smul.u32 4, %s19
      %p811 = scmp.lt.s32.totalorder %s18, 1
      %s812 = scalar_select %p811, %s18, 1
      %p813 = scmp.lt.s32.totalorder %s810, 3
      %s814 = scalar_select %p813, %s810, 3
      %s815 = smul.addr %s812, 4
      %s816 = sadd.s32 %s814, %s815
      %s817 = scalar_lea.vmem %s3, %s816
      // Predicated region
      $region33: #{medicalnet_perceptual_similarity.1} parent=31 // pred_check
        %p818 = pneg %p123
      $region34: #{medicalnet_perceptual_similarity.1} parent=31 // pred_check_branch
        %820 = sbr.rel (%p818) target = $region36
      $region35: #{medicalnet_perceptual_similarity.1} parent=31 // pred_region
        %s821 = smul.u32 4, %s19
      $region36: #{medicalnet_perceptual_similarity.1} parent=31 // pred_fallthru
        _
    $region32: #{medicalnet_perceptual_similarity.1} parent=5 // pred_fallthru
      _
    %p822 = scmp.le.s32.totalorder 2, %s9
    // Predicated region
    $region37: #{medicalnet_perceptual_similarity.1} parent=5 // pred_check
      %p823 = pneg %p822
    $region38: #{medicalnet_perceptual_similarity.1} parent=5 // pred_check_branch
      %825 = sbr.rel (%p823) target = $region40
    $region39: #{medicalnet_perceptual_similarity.1} parent=5 // pred_region
      %s826 = ssub.s32 %s9, 2
      // Predicated region
      $region41: #{medicalnet_perceptual_similarity.1} parent=39 // pred_check
        %p827 = pneg %p129
      $region42: #{medicalnet_perceptual_similarity.1} parent=39 // pred_check_branch
        %829 = sbr.rel (%p827) target = $region44
      $region43: #{medicalnet_perceptual_similarity.1} parent=39 // pred_region
        %s830 = smul.u32 4, %s21
        %p831 = scmp.lt.s32.totalorder %s20, 1
        %s832 = scalar_select %p831, %s20, 1
        %p833 = scmp.lt.s32.totalorder %s830, 3
        %s834 = scalar_select %p833, %s830, 3
        %s835 = smul.addr %s832, 4
        %s836 = sadd.s32 %s834, %s835
        %s837 = scalar_lea.vmem %s3, %s836
      $region44: #{medicalnet_perceptual_similarity.1} parent=39 // pred_fallthru
        _
    $region40: #{medicalnet_perceptual_similarity.1} parent=5 // pred_fallthru
      _
  $region6: #{medicalnet_perceptual_similarity.1} parent=0 // loop_footer
    %s13 = sadd.s32 1, %s9
  $region7: #{medicalnet_perceptual_similarity.1} parent=0 // loop_footer_branch
    %8 = sbr.rel target = $region3
  $region8: #{medicalnet_perceptual_similarity.1} parent=0 // loop_exit
    _

</llo_original>
